<compile_context>
chip_gen: v5e
topology: v5e:2x2
jax: 0.10.0
libtpu: 0.0.40
codegen_flags: <defaults>
</compile_context>

<pallas_src>
import functools

import numpy as np
import jax
import jax.numpy as jnp
from jax.experimental import pallas as pl
from jax.experimental.pallas import tpu as pltpu


# ---- module hyper-parameters (ConvSparseNet(d=16, ny=10)) ---------------------
D, NY = 16, 10
HIDDEN = 128
H1, W1 = (D - 4) // 3 + 1, (NY - 4) // 3 + 1      # conv1 (k=4, s=3): (16,10)->(5,3)
H2, W2 = H1 - 3 + 1, W1 - 3 + 1                   # conv2 (k=3, s=1): (5,3)->(3,1)
N_IN = D * NY                                     # 160  flattened input features
N1 = 10 * H1 * W1                                 # 150  conv1 features (NCHW-flat)
N2 = 10 * H2 * W2                                 # 30   conv2 features = Linear in (10*3)

# ---- lane-aligned padded sizes -------------------------------------------------
K_PAD = 256            # padded input width   (>= N_IN, multiple of 128)
N1_PAD = 256           # padded conv1 width   (>= N1)
N2_PAD = 128           # padded conv2 width   (>= N2)
OUT_PAD = 128          # padded output width  (>= NY)

# Row layout of the 128-lane weight slab (slab B): [M2 | W1 | W2 | W3 | W4]
R_M2 = 0
R_L1 = N1_PAD                   # 256
R_L2 = R_L1 + HIDDEN            # 384
R_L3 = R_L2 + HIDDEN            # 512
R_L4 = R_L3 + HIDDEN            # 640
WB_ROWS = R_L4 + HIDDEN         # 768

# Demo batch block.  Use 128 (v5e) / 256 (v6e, v7x) for real batched workloads.
TB = 8


# ---- kernel --------------------------------------------------------------------
def _softplus(x):
    # PyTorch F.softplus (beta=1, threshold=20).  log1p-accurate without relying
    # on a log1p lowering: for small t, log(1+t) ~= t - t^2/2 (rel. err < 1e-8).
    t = jnp.exp(jnp.minimum(x, 20.0))
    sp = jnp.where(t < 1e-4, t * (1.0 - 0.5 * t), jnp.log(1.0 + t))
    return jnp.where(x > 20.0, x, sp)


def convsparse_kernel(x_ref, wa_ref, wb_ref, b_ref, out_ref):
    """Whole forward for one batch block: conv1/conv2 (lowered to dense matmuls),
    softplus, and the 4-layer MLP.  Weights bf16, f32 accumulation."""

    def mm(a, w):                       # bf16 MXU inputs, f32 accumulate
        return jnp.dot(a.astype(jnp.bfloat16), w,
                       preferred_element_type=jnp.float32)

    h = _softplus(mm(x_ref[...], wa_ref[...]) + b_ref[0:1, :])                    # (TB, 256)
    h = _softplus(mm(h, wb_ref[R_M2:R_M2 + N1_PAD, :]) + b_ref[1:2, :N2_PAD])     # (TB, 128)
    h = _softplus(mm(h, wb_ref[R_L1:R_L1 + HIDDEN, :]) + b_ref[2:3, :HIDDEN])     # (TB, 128)
    h = _softplus(mm(h, wb_ref[R_L2:R_L2 + HIDDEN, :]) + b_ref[3:4, :HIDDEN])     # (TB, 128)
    h = _softplus(mm(h, wb_ref[R_L3:R_L3 + HIDDEN, :]) + b_ref[4:5, :HIDDEN])     # (TB, 128)
    out_ref[...] = mm(h, wb_ref[R_L4:R_L4 + HIDDEN, :]) + b_ref[5:6, :OUT_PAD]    # (TB, 128)


# ---- one-time parameter setup (host) -------------------------------------------
def make_raw_params(key):
    """PyTorch-default-style init: uniform(-1/sqrt(fan_in), 1/sqrt(fan_in))."""
    ks = jax.random.split(key, 12)

    def unif(k, shape, fan_in):
        lim = 1.0 / float(np.sqrt(fan_in))
        return jax.random.uniform(k, shape, jnp.float32, -lim, lim)

    return {
        "w_conv1": unif(ks[0], (10, 1, 4, 4), 1 * 4 * 4),
        "b_conv1": unif(ks[1], (10,), 1 * 4 * 4),
        "w_conv2": unif(ks[2], (10, 10, 3, 3), 10 * 3 * 3),
        "b_conv2": unif(ks[3], (10,), 10 * 3 * 3),
        "w_l1": unif(ks[4], (HIDDEN, N2), N2),      # PyTorch (out, in)
        "b_l1": unif(ks[5], (HIDDEN,), N2),
        "w_l2": unif(ks[6], (HIDDEN, HIDDEN), HIDDEN),
        "b_l2": unif(ks[7], (HIDDEN,), HIDDEN),
        "w_l3": unif(ks[8], (HIDDEN, HIDDEN), HIDDEN),
        "b_l3": unif(ks[9], (HIDDEN,), HIDDEN),
        "w_l4": unif(ks[10], (NY, HIDDEN), HIDDEN),
        "b_l4": unif(ks[11], (NY,), HIDDEN),
    }


def pack_params(p):
    """Lower both convs to dense Toeplitz matrices (NCHW-flatten ordering) and pack
    all parameters into 3 lane-aligned slabs.  Runs ONCE at model setup."""
    w1 = np.asarray(p["w_conv1"], np.float32)
    w2 = np.asarray(p["w_conv2"], np.float32)

    # conv1: (d, ny) row-major flat -> (10, H1, W1) NCHW-flat
    M1 = np.zeros((N_IN, N1), np.float32)
    for oc in range(10):
        for oh in range(H1):
            for ow in range(W1):
                o = oc * (H1 * W1) + oh * W1 + ow
                for kh in range(4):
                    for kw in range(4):
                        M1[(oh * 3 + kh) * NY + (ow * 3 + kw), o] = w1[oc, 0, kh, kw]

    # conv2: (10, H1, W1) NCHW-flat -> (10, H2, W2) NCHW-flat
    M2 = np.zeros((N1, N2), np.float32)
    for oc in range(10):
        for oh in range(H2):
            for ow in range(W2):
                o = oc * (H2 * W2) + oh * W2 + ow
                for ic in range(10):
                    for kh in range(3):
                        for kw in range(3):
                            M2[ic * (H1 * W1) + (oh + kh) * W1 + (ow + kw), o] = \
                                w2[oc, ic, kh, kw]

    # Slab A: padded conv1 matrix (K_PAD, N1_PAD); padded rows/cols are zero.
    WA = np.zeros((K_PAD, N1_PAD), np.float32)
    WA[:N_IN, :N1] = M1

    # Slab B: conv2 + the 4 Linear layers stacked along rows, 128 lanes wide.
    # Zero rows beyond each layer's real fan-in kill the softplus(0) junk in
    # the padded lanes of the previous activation.
    WB = np.zeros((WB_ROWS, HIDDEN), np.float32)
    WB[R_M2:R_M2 + N1, :N2] = M2
    WB[R_L1:R_L1 + N2, :] = np.asarray(p["w_l1"], np.float32).T       # (30, 128)
    WB[R_L2:R_L2 + HIDDEN, :] = np.asarray(p["w_l2"], np.float32).T
    WB[R_L3:R_L3 + HIDDEN, :] = np.asarray(p["w_l3"], np.float32).T
    WB[R_L4:R_L4 + HIDDEN, :NY] = np.asarray(p["w_l4"], np.float32).T  # (128, 10)

    # Bias slab: one row per layer (conv biases broadcast over spatial), zero in
    # every padded lane so padded output columns stay exactly 0.
    BIAS = np.zeros((8, N1_PAD), np.float32)
    BIAS[0, :N1] = np.repeat(np.asarray(p["b_conv1"], np.float32), H1 * W1)
    BIAS[1, :N2] = np.repeat(np.asarray(p["b_conv2"], np.float32), H2 * W2)
    BIAS[2, :HIDDEN] = np.asarray(p["b_l1"], np.float32)
    BIAS[3, :HIDDEN] = np.asarray(p["b_l2"], np.float32)
    BIAS[4, :HIDDEN] = np.asarray(p["b_l3"], np.float32)
    BIAS[5, :NY] = np.asarray(p["b_l4"], np.float32)

    return {
        "wa": jnp.asarray(WA, jnp.bfloat16),       # weights in bf16 (halved DMA)
        "wb": jnp.asarray(WB, jnp.bfloat16),
        "bias": jnp.asarray(BIAS, jnp.float32),    # biases stay f32
    }


def _round_bf16(a):
    return a.astype(jnp.bfloat16).astype(jnp.float32)


def init_model(key):
    """Build parameters once: bf16-rounded weights, Toeplitz lowering, packing."""
    raw = make_raw_params(key)
    # Round weights through bf16 so the packed kernel slabs and the pure-JAX
    # reference use identical weight values.
    ref_params = {k: (_round_bf16(v) if k.startswith("w_") else v)
                  for k, v in raw.items()}
    packed = pack_params(ref_params)
    return packed, ref_params


# ---- jitted forward wrapper ------------------------------------------------------
@functools.partial(jax.jit, static_argnames=("tb",))
def conv_sparse_net_forward(x_batch, packed, *, tb=TB):
    """Batched forward: each row of x_batch is one (d, ny) sample, i.e. one call of
    the original batch-1 PyTorch forward."""
    bsz = x_batch.shape[0]
    x = x_batch.reshape(bsz, N_IN).astype(jnp.float32)

    bp = ((bsz + tb - 1) // tb) * tb                    # pad batch to a tb multiple
    x = jnp.pad(x, ((0, bp - bsz), (0, K_PAD - N_IN)))  # lane-pad input 160 -> 256

    out = pl.pallas_call(
        convsparse_kernel,
        out_shape=jax.ShapeDtypeStruct((bp, OUT_PAD), jnp.float32),
        grid_spec=pltpu.PrefetchScalarGridSpec(
            num_scalar_prefetch=0,
            grid=(bp // tb,),
            in_specs=[
                pl.BlockSpec((tb, K_PAD), lambda i: (i, 0)),       # x: one block / step
                pl.BlockSpec((K_PAD, N1_PAD), lambda i: (0, 0)),   # weight slab A (resident)
                pl.BlockSpec((WB_ROWS, HIDDEN), lambda i: (0, 0)),  # weight slab B (resident)
                pl.BlockSpec((8, N1_PAD), lambda i: (0, 0)),       # bias slab (resident)
            ],
            out_specs=pl.BlockSpec((tb, OUT_PAD), lambda i: (i, 0)),
        ),
        compiler_params=pltpu.CompilerParams(
            dimension_semantics=("parallel",)),   # v7x: shard batch grid over 2 TCs
    )(x, packed["wa"], packed["wb"], packed["bias"])

    return out[:bsz, :NY]


# ---- pure-JAX reference (replicates the PyTorch forward per sample) --------------
def reference_forward(x_batch, p):
    bf = lambda a: a.astype(jnp.bfloat16)
    dn = ("NCHW", "OIHW", "NCHW")
    x = x_batch.reshape(-1, 1, D, NY).astype(jnp.float32)
    h = jax.lax.conv_general_dilated(bf(x), bf(p["w_conv1"]), (3, 3), "VALID",
                                     dimension_numbers=dn,
                                     preferred_element_type=jnp.float32)
    h = jax.nn.softplus(h + p["b_conv1"].reshape(1, 10, 1, 1))
    h = jax.lax.conv_general_dilated(bf(h), bf(p["w_conv2"]), (1, 1), "VALID",
                                     dimension_numbers=dn,
                                     preferred_element_type=jnp.float32)
    h = jax.nn.softplus(h + p["b_conv2"].reshape(1, 10, 1, 1))
    h = h.reshape(h.shape[0], -1)                          # NCHW flatten, (B, 30)

    def lin(a, w, b):
        return jnp.dot(bf(a), bf(w.T), preferred_element_type=jnp.float32) + b

    h = jax.nn.softplus(lin(h, p["w_l1"], p["b_l1"]))
    h = jax.nn.softplus(lin(h, p["w_l2"], p["b_l2"]))
    h = jax.nn.softplus(lin(h, p["w_l3"], p["b_l3"]))
    return lin(h, p["w_l4"], p["b_l4"])


if __name__ == "__main__":
    key = jax.random.PRNGKey(0)
    k_x, k_p = jax.random.split(key)

    packed, ref_params = init_model(k_p)          # one-time parameter lowering/packing

    B = 16                                        # small demo batch; TB=8 -> grid=(2,)
    x = jax.random.normal(k_x, (B, D, NY), dtype=jnp.float32)

    out = jax.block_until_ready(conv_sparse_net_forward(x, packed))
    ref = jax.block_until_ready(reference_forward(x, ref_params))

    np.testing.assert_allclose(np.asarray(out), np.asarray(ref), rtol=1e-2, atol=1e-2)
    assert out.shape == (B, NY)
    print("KERNEL_OK")
</pallas_src>

<mosaic_0001>
module attributes {stable_mosaic.version = 11 : i64} {
  func.func @convsparse_kernel(%arg0: i32, %arg1: memref<8x256xf32, #tpu.memory_space<vmem>>, %arg2: memref<256x256xbf16, #tpu.memory_space<vmem>>, %arg3: memref<768x128xbf16, #tpu.memory_space<vmem>>, %arg4: memref<8x256xf32, #tpu.memory_space<vmem>>, %arg5: memref<8x128xf32, #tpu.memory_space<vmem>>) attributes {dimension_semantics = [#tpu.dimension_semantics<parallel>], iteration_bounds = array<i64: 2>, scalar_prefetch = 0 : i64, scratch_operands = 0 : i64, tpu.core_type = #tpu.core_type<tc>, window_params = [{transform_indices = @transform_0, window_bounds = array<i64: 8, 256>}, {pipeline_mode = #tpu.pipeline_mode<synchronous>, transform_indices = @transform_1, window_bounds = array<i64: 256, 256>}, {pipeline_mode = #tpu.pipeline_mode<synchronous>, transform_indices = @transform_2, window_bounds = array<i64: 768, 128>}, {pipeline_mode = #tpu.pipeline_mode<synchronous>, transform_indices = @transform_3, window_bounds = array<i64: 8, 256>}, {transform_indices = @transform_4, window_bounds = array<i64: 8, 128>}]} {
    %c0 = arith.constant 0 : index
    %c0_0 = arith.constant 0 : index
    %0 = vector.load %arg1[%c0, %c0_0] : memref<8x256xf32, #tpu.memory_space<vmem>>, vector<8x256xf32>
    %c0_1 = arith.constant 0 : index
    %c0_2 = arith.constant 0 : index
    %1 = vector.load %arg2[%c0_1, %c0_2] : memref<256x256xbf16, #tpu.memory_space<vmem>>, vector<256x256xbf16>
    %2 = arith.truncf %0 : vector<8x256xf32> to vector<8x256xbf16>
    %cst = arith.constant dense<0.000000e+00> : vector<8x256xf32>
    %3 = tpu.matmul %2, %1, %cst {dimension_numbers = #tpu.dot_dimension_numbers<[1], [0], [0], [1], [0, 0, 1, 1], [], []>} : vector<8x256xbf16>, vector<256x256xbf16>, vector<8x256xf32> -> vector<8x256xf32>
    %c0_3 = arith.constant 0 : index
    %c0_4 = arith.constant 0 : index
    %4 = vector.load %arg4[%c0_3, %c0_4] : memref<8x256xf32, #tpu.memory_space<vmem>>, vector<1x256xf32>
    %5 = vector.broadcast %4 : vector<1x256xf32> to vector<8x256xf32>
    %6 = arith.addf %3, %5 : vector<8x256xf32>
    %cst_5 = arith.constant 2.000000e+01 : f32
    %7 = vector.broadcast %cst_5 : f32 to vector<8x256xf32>
    %8 = arith.minimumf %6, %7 : vector<8x256xf32>
    %9 = math.exp %8 : vector<8x256xf32>
    %cst_6 = arith.constant 9.99999974E-5 : f32
    %10 = vector.broadcast %cst_6 : f32 to vector<8x256xf32>
    %11 = arith.cmpf olt, %9, %10 : vector<8x256xf32>
    %cst_7 = arith.constant 5.000000e-01 : f32
    %12 = vector.broadcast %cst_7 : f32 to vector<8x256xf32>
    %13 = arith.mulf %12, %9 : vector<8x256xf32>
    %cst_8 = arith.constant 1.000000e+00 : f32
    %14 = vector.broadcast %cst_8 : f32 to vector<8x256xf32>
    %15 = arith.subf %14, %13 : vector<8x256xf32>
    %16 = arith.mulf %9, %15 : vector<8x256xf32>
    %cst_9 = arith.constant 1.000000e+00 : f32
    %17 = vector.broadcast %cst_9 : f32 to vector<8x256xf32>
    %18 = arith.addf %17, %9 : vector<8x256xf32>
    %19 = math.log %18 : vector<8x256xf32>
    %20 = arith.select %11, %16, %19 : vector<8x256xi1>, vector<8x256xf32>
    %cst_10 = arith.constant 2.000000e+01 : f32
    %21 = vector.broadcast %cst_10 : f32 to vector<8x256xf32>
    %22 = arith.cmpf ogt, %6, %21 : vector<8x256xf32>
    %23 = arith.select %22, %6, %20 : vector<8x256xi1>, vector<8x256xf32>
    %c0_11 = arith.constant 0 : index
    %c0_12 = arith.constant 0 : index
    %24 = vector.load %arg3[%c0_11, %c0_12] : memref<768x128xbf16, #tpu.memory_space<vmem>>, vector<256x128xbf16>
    %25 = arith.truncf %23 : vector<8x256xf32> to vector<8x256xbf16>
    %cst_13 = arith.constant dense<0.000000e+00> : vector<8x128xf32>
    %26 = tpu.matmul %25, %24, %cst_13 {dimension_numbers = #tpu.dot_dimension_numbers<[1], [0], [0], [1], [0, 0, 1, 1], [], []>} : vector<8x256xbf16>, vector<256x128xbf16>, vector<8x128xf32> -> vector<8x128xf32>
    %c1 = arith.constant 1 : index
    %c0_14 = arith.constant 0 : index
    %27 = vector.load %arg4[%c1, %c0_14] : memref<8x256xf32, #tpu.memory_space<vmem>>, vector<1x128xf32>
    %28 = vector.broadcast %27 : vector<1x128xf32> to vector<8x128xf32>
    %29 = arith.addf %26, %28 : vector<8x128xf32>
    %cst_15 = arith.constant 2.000000e+01 : f32
    %30 = vector.broadcast %cst_15 : f32 to vector<8x128xf32>
    %31 = arith.minimumf %29, %30 : vector<8x128xf32>
    %32 = math.exp %31 : vector<8x128xf32>
    %cst_16 = arith.constant 9.99999974E-5 : f32
    %33 = vector.broadcast %cst_16 : f32 to vector<8x128xf32>
    %34 = arith.cmpf olt, %32, %33 : vector<8x128xf32>
    %cst_17 = arith.constant 5.000000e-01 : f32
    %35 = vector.broadcast %cst_17 : f32 to vector<8x128xf32>
    %36 = arith.mulf %35, %32 : vector<8x128xf32>
    %cst_18 = arith.constant 1.000000e+00 : f32
    %37 = vector.broadcast %cst_18 : f32 to vector<8x128xf32>
    %38 = arith.subf %37, %36 : vector<8x128xf32>
    %39 = arith.mulf %32, %38 : vector<8x128xf32>
    %cst_19 = arith.constant 1.000000e+00 : f32
    %40 = vector.broadcast %cst_19 : f32 to vector<8x128xf32>
    %41 = arith.addf %40, %32 : vector<8x128xf32>
    %42 = math.log %41 : vector<8x128xf32>
    %43 = arith.select %34, %39, %42 : vector<8x128xi1>, vector<8x128xf32>
    %cst_20 = arith.constant 2.000000e+01 : f32
    %44 = vector.broadcast %cst_20 : f32 to vector<8x128xf32>
    %45 = arith.cmpf ogt, %29, %44 : vector<8x128xf32>
    %46 = arith.select %45, %29, %43 : vector<8x128xi1>, vector<8x128xf32>
    %c256 = arith.constant 256 : index
    %c0_21 = arith.constant 0 : index
    %47 = vector.load %arg3[%c256, %c0_21] : memref<768x128xbf16, #tpu.memory_space<vmem>>, vector<128x128xbf16>
    %48 = arith.truncf %46 : vector<8x128xf32> to vector<8x128xbf16>
    %cst_22 = arith.constant dense<0.000000e+00> : vector<8x128xf32>
    %49 = tpu.matmul %48, %47, %cst_22 {dimension_numbers = #tpu.dot_dimension_numbers<[1], [0], [0], [1], [0, 0, 1, 1], [], []>} : vector<8x128xbf16>, vector<128x128xbf16>, vector<8x128xf32> -> vector<8x128xf32>
    %c2 = arith.constant 2 : index
    %c0_23 = arith.constant 0 : index
    %50 = vector.load %arg4[%c2, %c0_23] : memref<8x256xf32, #tpu.memory_space<vmem>>, vector<1x128xf32>
    %51 = vector.broadcast %50 : vector<1x128xf32> to vector<8x128xf32>
    %52 = arith.addf %49, %51 : vector<8x128xf32>
    %cst_24 = arith.constant 2.000000e+01 : f32
    %53 = vector.broadcast %cst_24 : f32 to vector<8x128xf32>
    %54 = arith.minimumf %52, %53 : vector<8x128xf32>
    %55 = math.exp %54 : vector<8x128xf32>
    %cst_25 = arith.constant 9.99999974E-5 : f32
    %56 = vector.broadcast %cst_25 : f32 to vector<8x128xf32>
    %57 = arith.cmpf olt, %55, %56 : vector<8x128xf32>
    %cst_26 = arith.constant 5.000000e-01 : f32
    %58 = vector.broadcast %cst_26 : f32 to vector<8x128xf32>
    %59 = arith.mulf %58, %55 : vector<8x128xf32>
    %cst_27 = arith.constant 1.000000e+00 : f32
    %60 = vector.broadcast %cst_27 : f32 to vector<8x128xf32>
    %61 = arith.subf %60, %59 : vector<8x128xf32>
    %62 = arith.mulf %55, %61 : vector<8x128xf32>
    %cst_28 = arith.constant 1.000000e+00 : f32
    %63 = vector.broadcast %cst_28 : f32 to vector<8x128xf32>
    %64 = arith.addf %63, %55 : vector<8x128xf32>
    %65 = math.log %64 : vector<8x128xf32>
    %66 = arith.select %57, %62, %65 : vector<8x128xi1>, vector<8x128xf32>
    %cst_29 = arith.constant 2.000000e+01 : f32
    %67 = vector.broadcast %cst_29 : f32 to vector<8x128xf32>
    %68 = arith.cmpf ogt, %52, %67 : vector<8x128xf32>
    %69 = arith.select %68, %52, %66 : vector<8x128xi1>, vector<8x128xf32>
    %c384 = arith.constant 384 : index
    %c0_30 = arith.constant 0 : index
    %70 = vector.load %arg3[%c384, %c0_30] : memref<768x128xbf16, #tpu.memory_space<vmem>>, vector<128x128xbf16>
    %71 = arith.truncf %69 : vector<8x128xf32> to vector<8x128xbf16>
    %cst_31 = arith.constant dense<0.000000e+00> : vector<8x128xf32>
    %72 = tpu.matmul %71, %70, %cst_31 {dimension_numbers = #tpu.dot_dimension_numbers<[1], [0], [0], [1], [0, 0, 1, 1], [], []>} : vector<8x128xbf16>, vector<128x128xbf16>, vector<8x128xf32> -> vector<8x128xf32>
    %c3 = arith.constant 3 : index
    %c0_32 = arith.constant 0 : index
    %73 = vector.load %arg4[%c3, %c0_32] : memref<8x256xf32, #tpu.memory_space<vmem>>, vector<1x128xf32>
    %74 = vector.broadcast %73 : vector<1x128xf32> to vector<8x128xf32>
    %75 = arith.addf %72, %74 : vector<8x128xf32>
    %cst_33 = arith.constant 2.000000e+01 : f32
    %76 = vector.broadcast %cst_33 : f32 to vector<8x128xf32>
    %77 = arith.minimumf %75, %76 : vector<8x128xf32>
    %78 = math.exp %77 : vector<8x128xf32>
    %cst_34 = arith.constant 9.99999974E-5 : f32
    %79 = vector.broadcast %cst_34 : f32 to vector<8x128xf32>
    %80 = arith.cmpf olt, %78, %79 : vector<8x128xf32>
    %cst_35 = arith.constant 5.000000e-01 : f32
    %81 = vector.broadcast %cst_35 : f32 to vector<8x128xf32>
    %82 = arith.mulf %81, %78 : vector<8x128xf32>
    %cst_36 = arith.constant 1.000000e+00 : f32
    %83 = vector.broadcast %cst_36 : f32 to vector<8x128xf32>
    %84 = arith.subf %83, %82 : vector<8x128xf32>
    %85 = arith.mulf %78, %84 : vector<8x128xf32>
    %cst_37 = arith.constant 1.000000e+00 : f32
    %86 = vector.broadcast %cst_37 : f32 to vector<8x128xf32>
    %87 = arith.addf %86, %78 : vector<8x128xf32>
    %88 = math.log %87 : vector<8x128xf32>
    %89 = arith.select %80, %85, %88 : vector<8x128xi1>, vector<8x128xf32>
    %cst_38 = arith.constant 2.000000e+01 : f32
    %90 = vector.broadcast %cst_38 : f32 to vector<8x128xf32>
    %91 = arith.cmpf ogt, %75, %90 : vector<8x128xf32>
    %92 = arith.select %91, %75, %89 : vector<8x128xi1>, vector<8x128xf32>
    %c512 = arith.constant 512 : index
    %c0_39 = arith.constant 0 : index
    %93 = vector.load %arg3[%c512, %c0_39] : memref<768x128xbf16, #tpu.memory_space<vmem>>, vector<128x128xbf16>
    %94 = arith.truncf %92 : vector<8x128xf32> to vector<8x128xbf16>
    %cst_40 = arith.constant dense<0.000000e+00> : vector<8x128xf32>
    %95 = tpu.matmul %94, %93, %cst_40 {dimension_numbers = #tpu.dot_dimension_numbers<[1], [0], [0], [1], [0, 0, 1, 1], [], []>} : vector<8x128xbf16>, vector<128x128xbf16>, vector<8x128xf32> -> vector<8x128xf32>
    %c4 = arith.constant 4 : index
    %c0_41 = arith.constant 0 : index
    %96 = vector.load %arg4[%c4, %c0_41] : memref<8x256xf32, #tpu.memory_space<vmem>>, vector<1x128xf32>
    %97 = vector.broadcast %96 : vector<1x128xf32> to vector<8x128xf32>
    %98 = arith.addf %95, %97 : vector<8x128xf32>
    %cst_42 = arith.constant 2.000000e+01 : f32
    %99 = vector.broadcast %cst_42 : f32 to vector<8x128xf32>
    %100 = arith.minimumf %98, %99 : vector<8x128xf32>
    %101 = math.exp %100 : vector<8x128xf32>
    %cst_43 = arith.constant 9.99999974E-5 : f32
    %102 = vector.broadcast %cst_43 : f32 to vector<8x128xf32>
    %103 = arith.cmpf olt, %101, %102 : vector<8x128xf32>
    %cst_44 = arith.constant 5.000000e-01 : f32
    %104 = vector.broadcast %cst_44 : f32 to vector<8x128xf32>
    %105 = arith.mulf %104, %101 : vector<8x128xf32>
    %cst_45 = arith.constant 1.000000e+00 : f32
    %106 = vector.broadcast %cst_45 : f32 to vector<8x128xf32>
    %107 = arith.subf %106, %105 : vector<8x128xf32>
    %108 = arith.mulf %101, %107 : vector<8x128xf32>
    %cst_46 = arith.constant 1.000000e+00 : f32
    %109 = vector.broadcast %cst_46 : f32 to vector<8x128xf32>
    %110 = arith.addf %109, %101 : vector<8x128xf32>
    %111 = math.log %110 : vector<8x128xf32>
    %112 = arith.select %103, %108, %111 : vector<8x128xi1>, vector<8x128xf32>
    %cst_47 = arith.constant 2.000000e+01 : f32
    %113 = vector.broadcast %cst_47 : f32 to vector<8x128xf32>
    %114 = arith.cmpf ogt, %98, %113 : vector<8x128xf32>
    %115 = arith.select %114, %98, %112 : vector<8x128xi1>, vector<8x128xf32>
    %c640 = arith.constant 640 : index
    %c0_48 = arith.constant 0 : index
    %116 = vector.load %arg3[%c640, %c0_48] : memref<768x128xbf16, #tpu.memory_space<vmem>>, vector<128x128xbf16>
    %117 = arith.truncf %115 : vector<8x128xf32> to vector<8x128xbf16>
    %cst_49 = arith.constant dense<0.000000e+00> : vector<8x128xf32>
    %118 = tpu.matmul %117, %116, %cst_49 {dimension_numbers = #tpu.dot_dimension_numbers<[1], [0], [0], [1], [0, 0, 1, 1], [], []>} : vector<8x128xbf16>, vector<128x128xbf16>, vector<8x128xf32> -> vector<8x128xf32>
    %c5 = arith.constant 5 : index
    %c0_50 = arith.constant 0 : index
    %119 = vector.load %arg4[%c5, %c0_50] : memref<8x256xf32, #tpu.memory_space<vmem>>, vector<1x128xf32>
    %120 = vector.broadcast %119 : vector<1x128xf32> to vector<8x128xf32>
    %121 = arith.addf %118, %120 : vector<8x128xf32>
    %c0_51 = arith.constant 0 : index
    %c0_52 = arith.constant 0 : index
    %122 = vector.load %arg5[%c0_51, %c0_52] : memref<8x128xf32, #tpu.memory_space<vmem>>, vector<8x128xf32>
    tpu.vector_store %arg5[%c0_51, %c0_52], %121 {strides = array<i32>} : memref<8x128xf32, #tpu.memory_space<vmem>>, vector<8x128xf32>,
    return
  }
  func.func @transform_0(%arg0: i32) -> (i32, i32) {
    %c0_i32 = arith.constant 0 : i32
    %c0_i32_0 = arith.constant 0 : i32
    return %arg0, %c0_i32 : i32, i32
  }
  func.func @transform_1(%arg0: i32) -> (i32, i32) {
    %c0_i32 = arith.constant 0 : i32
    %c0_i32_0 = arith.constant 0 : i32
    %c0_i32_1 = arith.constant 0 : i32
    return %c0_i32, %c0_i32_0 : i32, i32
  }
  func.func @transform_2(%arg0: i32) -> (i32, i32) {
    %c0_i32 = arith.constant 0 : i32
    %c0_i32_0 = arith.constant 0 : i32
    %c0_i32_1 = arith.constant 0 : i32
    return %c0_i32, %c0_i32_0 : i32, i32
  }
  func.func @transform_3(%arg0: i32) -> (i32, i32) {
    %c0_i32 = arith.constant 0 : i32
    %c0_i32_0 = arith.constant 0 : i32
    %c0_i32_1 = arith.constant 0 : i32
    return %c0_i32, %c0_i32_0 : i32, i32
  }
  func.func @transform_4(%arg0: i32) -> (i32, i32) {
    %c0_i32 = arith.constant 0 : i32
    %c0_i32_0 = arith.constant 0 : i32
    return %arg0, %c0_i32 : i32, i32
  }
}

</mosaic_0001>

<llo_original>
// kernel: conv_sparse_net_forward.1
$region0: #{conv_sparse_net_forward.1}
  #allocation0 [shape = 'u32[]', space=smem, size = 0x4, offset = 0x4, fixed_abs, tag = 'smem constant byte address 0x4 - core index']
  #allocation1 [shape = 'u32[72,128]{1,0:T(1,128)}', space=vmem, size = 0x9000, scoped, tag = 'internal scratch']
  %s0 = inlined_call_operand.vmem [shape: f32[16,256], index: 0, kind: input, shape index: {}]
  %s1 = inlined_call_operand.vmem [shape: bf16[256,256], index: 1, kind: input, shape index: {}]
  %s2 = inlined_call_operand.vmem [shape: bf16[768,128], index: 2, kind: input, shape index: {}]
  %s3 = inlined_call_operand.vmem [shape: f32[8,256], index: 3, kind: input, shape index: {}]
  %s4 = inlined_call_operand.hbm [shape: f32[16,128], index: 4, kind: output, shape index: {}]
  %s5 = sld [smem:[#allocation0]]
  $region49: #{conv_sparse_net_forward.1} parent=0
    _
  %s7 = ssub.s32 1, %s5
  %s8 = scalar_select 0, %s7, %s5
  $region1: #{conv_sparse_net_forward.1} parent=0
    #allocation2 [shape = 'u8[8192]{0}', space=vmem, size = 0x2000, scoped, tag = 'output window, operand 0']
    #allocation3 [shape = 's32[2]{0}', space=sflag, size = 0x8, scoped, tag = 'scoped memory for conv_sparse_net_forward.1']
    %9 = vsyncpa [#allocation3], 0
    %s10 = scalar_lea.sflag [#allocation3], 1
    %11 = vsyncpa %s10, 0
    loop: start=0, step=1, limit=4
    $region2: #{conv_sparse_net_forward.1} parent=1 // loop_pre_header
      _
    $region3: #{conv_sparse_net_forward.1} parent=1 // loop_header
      %s13 = sphi 0, %s17
      %p14 = scmp.ge.s32.totalorder %s13, 4
      %s23 = sphi 0, %s25
      %s26 = sphi 0, %s23
      %s27 = sphi 0, %s26
      %s43 = sphi 0, %s27
      %s47 = sphi 0, %s47
      %s49 = sphi 0, %s47
      %s50 = sphi 0, %s49
      %s64 = sphi 0, %s50
      %s68 = sphi 0, %s68
      %s70 = sphi 0, %s68
      %s71 = sphi 0, %s70
      %s85 = sphi 0, %s71
      %s89 = sphi 0, %s89
      %s91 = sphi 0, %s89
      %s92 = sphi 0, %s91
      %s106 = sphi 0, %s92
      %s112 = sphi 0, %s114
      %s115 = sphi 0, %s112
      %s116 = sphi 0, %s115
      %s132 = sphi 0, %s116
    $region4: #{conv_sparse_net_forward.1} parent=1 // loop_header_branch
      %16 = sbr.rel (%p14) target = $region8
    $region5: #{conv_sparse_net_forward.1} parent=1 // loop_body
      %s18 = ssub.s32 %s13, 1
      %s19 = ssub.s32 %s13, 2
      %s20 = sadd.s32 %s13, 1
      %s21 = ssub.s32 %s13, %s20
      %p22 = scmp.eq.s32.totalorder %s21, 0
      %s24 = sadd.s32 %s23, 1
      %s25 = scalar_select %p22, %s23, %s24
      %p28 = pneg %p22
      %p29 = scmp.eq.s32.totalorder %s13, 1
      %p30 = por %p28, %p29
      %p31 = scmp.ne.s32.totalorder %s23, %s26
      %p32 = scmp.eq.s32.totalorder %s13, 0
      %p33 = por %p31, %p32
      %p34 = scmp.ne.s32.totalorder %s23, %s26
      %p35 = scmp.eq.s32.totalorder %s18, 1
      %p36 = por %p34, %p35
      %p37 = scmp.ne.s32.totalorder %s26, %s27
      %p38 = scmp.eq.s32.totalorder %s18, 0
      %p39 = por %p37, %p38
      %p40 = scmp.ne.s32.totalorder %s26, %s27
      %p41 = scmp.eq.s32.totalorder %s19, 1
      %p42 = por %p40, %p41
      %p44 = scmp.ne.s32.totalorder %s27, %s43
      %p45 = scmp.eq.s32.totalorder %s19, 0
      %p46 = por %p44, %p45
      %s48 = sadd.s32 %s47, 1
      %p51 = scmp.eq.s32.totalorder %s13, 1
      %p52 = scmp.ne.s32.totalorder %s47, %s49
      %p53 = scmp.eq.s32.totalorder %s13, 0
      %p54 = por %p52, %p53
      %p55 = scmp.ne.s32.totalorder %s47, %s49
      %p56 = scmp.eq.s32.totalorder %s18, 1
      %p57 = por %p55, %p56
      %p58 = scmp.ne.s32.totalorder %s49, %s50
      %p59 = scmp.eq.s32.totalorder %s18, 0
      %p60 = por %p58, %p59
      %p61 = scmp.ne.s32.totalorder %s49, %s50
      %p62 = scmp.eq.s32.totalorder %s19, 1
      %p63 = por %p61, %p62
      %p65 = scmp.ne.s32.totalorder %s50, %s64
      %p66 = scmp.eq.s32.totalorder %s19, 0
      %p67 = por %p65, %p66
      %s69 = sadd.s32 %s68, 1
      %p72 = scmp.eq.s32.totalorder %s13, 1
      %p73 = scmp.ne.s32.totalorder %s68, %s70
      %p74 = scmp.eq.s32.totalorder %s13, 0
      %p75 = por %p73, %p74
      %p76 = scmp.ne.s32.totalorder %s68, %s70
      %p77 = scmp.eq.s32.totalorder %s18, 1
      %p78 = por %p76, %p77
      %p79 = scmp.ne.s32.totalorder %s70, %s71
      %p80 = scmp.eq.s32.totalorder %s18, 0
      %p81 = por %p79, %p80
      %p82 = scmp.ne.s32.totalorder %s70, %s71
      %p83 = scmp.eq.s32.totalorder %s19, 1
      %p84 = por %p82, %p83
      %p86 = scmp.ne.s32.totalorder %s71, %s85
      %p87 = scmp.eq.s32.totalorder %s19, 0
      %p88 = por %p86, %p87
      %s90 = sadd.s32 %s89, 1
      %p93 = scmp.eq.s32.totalorder %s13, 1
      %p94 = scmp.ne.s32.totalorder %s89, %s91
      %p95 = scmp.eq.s32.totalorder %s13, 0
      %p96 = por %p94, %p95
      %p97 = scmp.ne.s32.totalorder %s89, %s91
      %p98 = scmp.eq.s32.totalorder %s18, 1
      %p99 = por %p97, %p98
      %p100 = scmp.ne.s32.totalorder %s91, %s92
      %p101 = scmp.eq.s32.totalorder %s18, 0
      %p102 = por %p100, %p101
      %p103 = scmp.ne.s32.totalorder %s91, %s92
      %p104 = scmp.eq.s32.totalorder %s19, 1
      %p105 = por %p103, %p104
      %p107 = scmp.ne.s32.totalorder %s92, %s106
      %p108 = scmp.eq.s32.totalorder %s19, 0
      %p109 = por %p107, %p108
      %s110 = ssub.s32 %s13, %s20
      %p111 = scmp.eq.s32.totalorder %s110, 0
      %s113 = sadd.s32 %s112, 1
      %s114 = scalar_select %p111, %s112, %s113
      %p117 = pneg %p111
      %p118 = scmp.eq.s32.totalorder %s13, 1
      %p119 = por %p117, %p118
      %p120 = scmp.ne.s32.totalorder %s112, %s115
      %p121 = scmp.eq.s32.totalorder %s13, 0
      %p122 = por %p120, %p121
      %p123 = scmp.ne.s32.totalorder %s112, %s115
      %p124 = scmp.eq.s32.totalorder %s18, 1
      %p125 = por %p123, %p124
      %p126 = scmp.ne.s32.totalorder %s115, %s116
      %p127 = scmp.eq.s32.totalorder %s18, 0
      %p128 = por %p126, %p127
      %p129 = scmp.ne.s32.totalorder %s115, %s116
      %p130 = scmp.eq.s32.totalorder %s19, 1
      %p131 = por %p129, %p130
      %p133 = scmp.ne.s32.totalorder %s116, %s132
      %p134 = scmp.eq.s32.totalorder %s19, 0
      %p135 = por %p133, %p134
      %p136 = scmp.le.s32.totalorder 1, %s13
      %p137 = scmp.lt.s32.totalorder %s13, 3
      %p138 = pnand %p136, %p137
      %p139 = pneg %p138
      // Predicated region
      $region9: #{conv_sparse_net_forward.1} parent=5 // pred_check
        _
      $region10: #{conv_sparse_net_forward.1} parent=5 // pred_check_branch
        %141 = sbr.rel (%p138) target = $region12
      $region11: #{conv_sparse_net_forward.1} parent=5 // pred_region
        %s142 = ssub.s32 %s13, 1
        // Predicated region
        $region13: #{conv_sparse_net_forward.1} parent=11 // pred_check
          %p143 = pneg %p60
        $region14: #{conv_sparse_net_forward.1} parent=11 // pred_check_branch
          %145 = sbr.rel (%p143) target = $region16
        $region15: #{conv_sparse_net_forward.1} parent=11 // pred_region
          _
        $region16: #{conv_sparse_net_forward.1} parent=11 // pred_fallthru
          _
        // Predicated region
        $region17: #{conv_sparse_net_forward.1} parent=11 // pred_check
          %p146 = pneg %p81
        $region18: #{conv_sparse_net_forward.1} parent=11 // pred_check_branch
          %148 = sbr.rel (%p146) target = $region20
        $region19: #{conv_sparse_net_forward.1} parent=11 // pred_region
          _
        $region20: #{conv_sparse_net_forward.1} parent=11 // pred_fallthru
          _
        // Predicated region
        $region21: #{conv_sparse_net_forward.1} parent=11 // pred_check
          %p149 = pneg %p102
        $region22: #{conv_sparse_net_forward.1} parent=11 // pred_check_branch
          %151 = sbr.rel (%p149) target = $region24
        $region23: #{conv_sparse_net_forward.1} parent=11 // pred_region
          _
        $region24: #{conv_sparse_net_forward.1} parent=11 // pred_fallthru
          _
      $region12: #{conv_sparse_net_forward.1} parent=5 // pred_fallthru
        _
      %p152 = scmp.lt.s32.totalorder %s13, 2
      // Predicated region
      $region25: #{conv_sparse_net_forward.1} parent=5 // pred_check
        %p153 = pneg %p152
      $region26: #{conv_sparse_net_forward.1} parent=5 // pred_check_branch
        %155 = sbr.rel (%p153) target = $region28
      $region27: #{conv_sparse_net_forward.1} parent=5 // pred_region
        // Predicated region
        $region29: #{conv_sparse_net_forward.1} parent=27 // pred_check
          %p156 = pneg %p33
        $region30: #{conv_sparse_net_forward.1} parent=27 // pred_check_branch
          %158 = sbr.rel (%p156) target = $region32
        $region31: #{conv_sparse_net_forward.1} parent=27 // pred_region
          %p159 = scmp.lt.s32.totalorder %s13, 1
          %s160 = scalar_select %p159, %s13, 1
          %s161 = smul.addr %s160, 2
          %s162 = smul.addr %s161, 8
          %s163 = scalar_lea.vmem %s0, %s162
        $region32: #{conv_sparse_net_forward.1} parent=27 // pred_fallthru
          _
      $region28: #{conv_sparse_net_forward.1} parent=5 // pred_fallthru
        _
      %p164 = scmp.le.s32.totalorder 1, %s13
      %p165 = scmp.lt.s32.totalorder %s13, 3
      %p166 = pnand %p164, %p165
      %p167 = pneg %p166
      // Predicated region
      $region33: #{conv_sparse_net_forward.1} parent=5 // pred_check
        _
      $region34: #{conv_sparse_net_forward.1} parent=5 // pred_check_branch
        %169 = sbr.rel (%p166) target = $region36
      $region35: #{conv_sparse_net_forward.1} parent=5 // pred_region
        %s170 = ssub.s32 %s13, 1
        %p171 = scmp.lt.s32.totalorder %s18, 1
        %s172 = scalar_select %p171, %s18, 1
        %s173 = smul.addr %s172, 2
        %s174 = smul.addr %s173, 8
        %s175 = scalar_lea.vmem %s0, %s174
        %p176 = pneg %p39
        %p177 = pneg %p36
        %p178 = pneg %p60
        %p179 = pneg %p57
        %p180 = pneg %p81
        %p181 = pneg %p78
        %p182 = pneg %p102
        %p183 = pneg %p99
        %p184 = pneg %p128
        %p185 = pneg %p125
        %s186 = sand.u32 %s115, 1
        %s187 = scalar_lea.sflag [#allocation3], %s186
        %s188 = sand.u32 %s115, 1
        %s189 = smul.addr %s188, 8
        %s190 = scalar_lea.vmem [#allocation2], %s189
        %p191 = scmp.lt.s32.totalorder %s18, 1
        %s192 = scalar_select %p191, %s18, 1
        %s193 = smul.addr %s192, 2
        %s194 = smul.addr %s193, 8
        %s195 = scalar_lea.vmem %s0, %s194
        %v196 = vld [vmem:[%s195] sm:$0xff]
        %v197 = vld [vmem:[%s195 + $0x8] sm:$0xff]
        %v198 = vld [vmem:[%s1] sm:$0xff]
        %v199 = vld [vmem:[%s1 + $0x8] sm:$0xff]
        %v200 = vld [vmem:[%s1 + $0x10] sm:$0xff]
        %v201 = vld [vmem:[%s1 + $0x18] sm:$0xff]
        %v202 = vld [vmem:[%s1 + $0x20] sm:$0xff]
        %v203 = vld [vmem:[%s1 + $0x28] sm:$0xff]
        %v204 = vld [vmem:[%s1 + $0x30] sm:$0xff]
        %v205 = vld [vmem:[%s1 + $0x38] sm:$0xff]
        %v206 = vld [vmem:[%s1 + $0x40] sm:$0xff]
        %v207 = vld [vmem:[%s1 + $0x48] sm:$0xff]
        %v208 = vld [vmem:[%s1 + $0x50] sm:$0xff]
        %v209 = vld [vmem:[%s1 + $0x58] sm:$0xff]
        %v210 = vld [vmem:[%s1 + $0x60] sm:$0xff]
        %v211 = vld [vmem:[%s1 + $0x68] sm:$0xff]
        %v212 = vld [vmem:[%s1 + $0x70] sm:$0xff]
        %v213 = vld [vmem:[%s1 + $0x78] sm:$0xff]
        %v214 = vld [vmem:[%s1 + $0x80] sm:$0xff]
        %v215 = vld [vmem:[%s1 + $0x88] sm:$0xff]
        %v216 = vld [vmem:[%s1 + $0x90] sm:$0xff]
        %v217 = vld [vmem:[%s1 + $0x98] sm:$0xff]
        %v218 = vld [vmem:[%s1 + $0xa0] sm:$0xff]
        %v219 = vld [vmem:[%s1 + $0xa8] sm:$0xff]
        %v220 = vld [vmem:[%s1 + $0xb0] sm:$0xff]
        %v221 = vld [vmem:[%s1 + $0xb8] sm:$0xff]
        %v222 = vld [vmem:[%s1 + $0xc0] sm:$0xff]
        %v223 = vld [vmem:[%s1 + $0xc8] sm:$0xff]
        %v224 = vld [vmem:[%s1 + $0xd0] sm:$0xff]
        %v225 = vld [vmem:[%s1 + $0xd8] sm:$0xff]
        %v226 = vld [vmem:[%s1 + $0xe0] sm:$0xff]
        %v227 = vld [vmem:[%s1 + $0xe8] sm:$0xff]
        %v228 = vld [vmem:[%s1 + $0xf0] sm:$0xff]
        %v229 = vld [vmem:[%s1 + $0xf8] sm:$0xff]
        %v230 = vpack.c.bf16 %v196, %v196
        %v231 = vpack.c.bf16 %v197, %v197
        %v232 = vld [vmem:[%s3] ss:$8 sm:$0x3]
        %v234 = vperm.slane %v232, 0
        %v235 = vperm.slane %v232, 1
        %v270 = vunpack.c.l.b16 %v198
        %v271 = vunpack.c.h.b16 %v198
        %v272 = vunpack.c.l.b16 %v199
        %v273 = vunpack.c.h.b16 %v199
        %v274 = vunpack.c.l.b16 %v200
        %v275 = vunpack.c.h.b16 %v200
        %v276 = vunpack.c.l.b16 %v201
        %v277 = vunpack.c.h.b16 %v201
        %v278 = vunpack.c.l.b16 %v202
        %v279 = vunpack.c.h.b16 %v202
        %v280 = vunpack.c.l.b16 %v203
        %v281 = vunpack.c.h.b16 %v203
        %v282 = vunpack.c.l.b16 %v204
        %v283 = vunpack.c.h.b16 %v204
        %v284 = vunpack.c.l.b16 %v205
        %v285 = vunpack.c.h.b16 %v205
        %v286 = vunpack.c.l.b16 %v206
        %v287 = vunpack.c.h.b16 %v206
        %v288 = vunpack.c.l.b16 %v207
        %v289 = vunpack.c.h.b16 %v207
        %v290 = vunpack.c.l.b16 %v208
        %v291 = vunpack.c.h.b16 %v208
        %v292 = vunpack.c.l.b16 %v209
        %v293 = vunpack.c.h.b16 %v209
        %v294 = vunpack.c.l.b16 %v210
        %v295 = vunpack.c.h.b16 %v210
        %v296 = vunpack.c.l.b16 %v211
        %v297 = vunpack.c.h.b16 %v211
        %v298 = vunpack.c.l.b16 %v212
        %v299 = vunpack.c.h.b16 %v212
        %v300 = vunpack.c.l.b16 %v213
        %v301 = vunpack.c.h.b16 %v213
        %v302 = vunpack.c.l.b16 %v214
        %v303 = vunpack.c.h.b16 %v214
        %v304 = vunpack.c.l.b16 %v215
        %v305 = vunpack.c.h.b16 %v215
        %v306 = vunpack.c.l.b16 %v216
        %v307 = vunpack.c.h.b16 %v216
        %v308 = vunpack.c.l.b16 %v217
        %v309 = vunpack.c.h.b16 %v217
        %v310 = vunpack.c.l.b16 %v218
        %v311 = vunpack.c.h.b16 %v218
        %v312 = vunpack.c.l.b16 %v219
        %v313 = vunpack.c.h.b16 %v219
        %v314 = vunpack.c.l.b16 %v220
        %v315 = vunpack.c.h.b16 %v220
        %v316 = vunpack.c.l.b16 %v221
        %v317 = vunpack.c.h.b16 %v221
        %v318 = vunpack.c.l.b16 %v222
        %v319 = vunpack.c.h.b16 %v222
        %v320 = vunpack.c.l.b16 %v223
        %v321 = vunpack.c.h.b16 %v223
        %v322 = vunpack.c.l.b16 %v224
        %v323 = vunpack.c.h.b16 %v224
        %v324 = vunpack.c.l.b16 %v225
        %v325 = vunpack.c.h.b16 %v225
        %v326 = vunpack.c.l.b16 %v226
        %v327 = vunpack.c.h.b16 %v226
        %v328 = vunpack.c.l.b16 %v227
        %v329 = vunpack.c.h.b16 %v227
        %v330 = vunpack.c.l.b16 %v228
        %v331 = vunpack.c.h.b16 %v228
        %v332 = vunpack.c.l.b16 %v229
        %v333 = vunpack.c.h.b16 %v229
        %v334 = vpack.c.b16 %v272, %v270
        %v335 = vpack.c.b16 %v273, %v271
        %v336 = vpack.c.b16 %v276, %v274
        %v337 = vpack.c.b16 %v277, %v275
        %v338 = vpack.c.b16 %v280, %v278
        %v339 = vpack.c.b16 %v281, %v279
        %v340 = vpack.c.b16 %v284, %v282
        %v341 = vpack.c.b16 %v285, %v283
        %v342 = vpack.c.b16 %v288, %v286
        %v343 = vpack.c.b16 %v289, %v287
        %v344 = vpack.c.b16 %v292, %v290
        %v345 = vpack.c.b16 %v293, %v291
        %v346 = vpack.c.b16 %v296, %v294
        %v347 = vpack.c.b16 %v297, %v295
        %v348 = vpack.c.b16 %v300, %v298
        %v349 = vpack.c.b16 %v301, %v299
        %v350 = vpack.c.b16 %v304, %v302
        %v351 = vpack.c.b16 %v305, %v303
        %v352 = vpack.c.b16 %v308, %v306
        %v353 = vpack.c.b16 %v309, %v307
        %v354 = vpack.c.b16 %v312, %v310
        %v355 = vpack.c.b16 %v313, %v311
        %v356 = vpack.c.b16 %v316, %v314
        %v357 = vpack.c.b16 %v317, %v315
        %v358 = vpack.c.b16 %v320, %v318
        %v359 = vpack.c.b16 %v321, %v319
        %v360 = vpack.c.b16 %v324, %v322
        %v361 = vpack.c.b16 %v325, %v323
        %v362 = vpack.c.b16 %v328, %v326
        %v363 = vpack.c.b16 %v329, %v327
        %v364 = vpack.c.b16 %v332, %v330
        %v365 = vpack.c.b16 %v333, %v331
        %398 = vmatpush.bf16.msra.mxu0 %v348
        %399 = vmatpush.bf16.msra.mxu0 %v346
        %400 = vmatpush.bf16.msra.mxu0 %v344
        %401 = vmatpush.bf16.msra.mxu0 %v342
        %402 = vmatpush.bf16.msra.mxu0 %v340
        %403 = vmatpush.bf16.msra.mxu0 %v338
        %404 = vmatpush.bf16.msra.mxu0 %v336
        %405 = vmatpush.bf16.msra.mxu0 %v334
        %406 = vmatmul.bf16.gmra.mxu0 %v230
        %v407 = vpop.f32.mrf.mxu0
        %v408 = vadd.f32 %v234, %v407
        %v409 = vpop.f32.mrf.mxu0
        %410 = vdwg.mxu0
        %411 = vmatpush.bf16.msra.mxu0 %v364
        %412 = vmatpush.bf16.msra.mxu0 %v362
        %413 = vmatpush.bf16.msra.mxu0 %v360
        %414 = vmatpush.bf16.msra.mxu0 %v358
        %415 = vmatpush.bf16.msra.mxu0 %v356
        %416 = vmatpush.bf16.msra.mxu0 %v354
        %417 = vmatpush.bf16.msra.mxu0 %v352
        %418 = vmatpush.bf16.msra.mxu0 %v350
        %419 = vmatmul.bf16.gmra.mxu0 %v231
        %v420 = vpop.f32.mrf.mxu0
        %v421 = vadd.f32 %v408, %v420
        %v422 = vpop.f32.mrf.mxu0
        %423 = vdwg.mxu0
        %424 = vmatpush.bf16.msra.mxu0 %v349
        %425 = vmatpush.bf16.msra.mxu0 %v347
        %426 = vmatpush.bf16.msra.mxu0 %v345
        %427 = vmatpush.bf16.msra.mxu0 %v343
        %428 = vmatpush.bf16.msra.mxu0 %v341
        %429 = vmatpush.bf16.msra.mxu0 %v339
        %430 = vmatpush.bf16.msra.mxu0 %v337
        %431 = vmatpush.bf16.msra.mxu0 %v335
        %432 = vmatmul.bf16.gmra.mxu0 %v230
        %v433 = vpop.f32.mrf.mxu0
        %v434 = vadd.f32 %v235, %v433
        %v435 = vpop.f32.mrf.mxu0
        %436 = vdwg.mxu0
        %437 = vmatpush.bf16.msra.mxu0 %v365
        %438 = vmatpush.bf16.msra.mxu0 %v363
        %439 = vmatpush.bf16.msra.mxu0 %v361
        %440 = vmatpush.bf16.msra.mxu0 %v359
        %441 = vmatpush.bf16.msra.mxu0 %v357
        %442 = vmatpush.bf16.msra.mxu0 %v355
        %443 = vmatpush.bf16.msra.mxu0 %v353
        %444 = vmatpush.bf16.msra.mxu0 %v351
        %445 = vmatmul.bf16.gmra.mxu0 %v231
        %v446 = vpop.f32.mrf.mxu0
        %v447 = vadd.f32 %v434, %v446
        %v448 = vpop.f32.mrf.mxu0
        %449 = vdwg.mxu0
        %v450 = vmin.f32 %v421, 20.0
        %v451 = vmin.f32 %v447, 20.0
        %v452 = vmul.f32 %v450, 1.442695
        %v453 = vpow.pop %v452
        %v454 = vmul.f32 %v451, 1.442695
        %v455 = vpow.pop %v454
        %vm456 = vcmp.lt.f32.partialorder %v453, 0.0001
        %vm457 = vcmp.lt.f32.partialorder %v455, 0.0001
        %v458 = vmul.f32 %v453, 0.5
        %v459 = vmul.f32 %v455, 0.5
        %v460 = vsub.f32 1.0, %v458
        %v461 = vsub.f32 1.0, %v459
        %v462 = vmul.f32 %v453, %v460
        %v463 = vmul.f32 %v455, %v461
        %v464 = vadd.f32 %v453, 1.0
        %v465 = vadd.f32 %v455, 1.0
        %v466 = vlog2.pop %v464
        %v467 = vmul.f32 %v466, 0.6931472
        %v468 = vlog2.pop %v465
        %v469 = vmul.f32 %v468, 0.6931472
        %v470 = vsel %vm456, %v462, %v467
        %v471 = vsel %vm457, %v463, %v469
        %vm472 = vcmp.gt.f32.partialorder %v421, 20.0
        %vm473 = vcmp.gt.f32.partialorder %v447, 20.0
        %v474 = vsel %vm472, %v421, %v470
        %v475 = vsel %vm473, %v447, %v471
        %v476 = vld [vmem:[%s2] sm:$0xf]
        %v477 = vld [vmem:[%s2 + $0x4] sm:$0xf]
        %v478 = vld [vmem:[%s2 + $0x8] sm:$0xf]
        %v479 = vld [vmem:[%s2 + $0xc] sm:$0xf]
        %v480 = vld [vmem:[%s2 + $0x10] sm:$0xf]
        %v481 = vld [vmem:[%s2 + $0x14] sm:$0xf]
        %v482 = vld [vmem:[%s2 + $0x18] sm:$0xf]
        %v483 = vld [vmem:[%s2 + $0x1c] sm:$0xf]
        %v484 = vld [vmem:[%s2 + $0x20] sm:$0xf]
        %v485 = vld [vmem:[%s2 + $0x24] sm:$0xf]
        %v486 = vld [vmem:[%s2 + $0x28] sm:$0xf]
        %v487 = vld [vmem:[%s2 + $0x2c] sm:$0xf]
        %v488 = vld [vmem:[%s2 + $0x30] sm:$0xf]
        %v489 = vld [vmem:[%s2 + $0x34] sm:$0xf]
        %v490 = vld [vmem:[%s2 + $0x38] sm:$0xf]
        %v491 = vld [vmem:[%s2 + $0x3c] sm:$0xf]
        %v492 = vld [vmem:[%s2 + $0x40] sm:$0xf]
        %v493 = vld [vmem:[%s2 + $0x44] sm:$0xf]
        %v494 = vld [vmem:[%s2 + $0x48] sm:$0xf]
        %v495 = vld [vmem:[%s2 + $0x4c] sm:$0xf]
        %v496 = vld [vmem:[%s2 + $0x50] sm:$0xf]
        %v497 = vld [vmem:[%s2 + $0x54] sm:$0xf]
        %v498 = vld [vmem:[%s2 + $0x58] sm:$0xf]
        %v499 = vld [vmem:[%s2 + $0x5c] sm:$0xf]
        %v500 = vld [vmem:[%s2 + $0x60] sm:$0xf]
        %v501 = vld [vmem:[%s2 + $0x64] sm:$0xf]
        %v502 = vld [vmem:[%s2 + $0x68] sm:$0xf]
        %v503 = vld [vmem:[%s2 + $0x6c] sm:$0xf]
        %v504 = vld [vmem:[%s2 + $0x70] sm:$0xf]
        %v505 = vld [vmem:[%s2 + $0x74] sm:$0xf]
        %v506 = vld [vmem:[%s2 + $0x78] sm:$0xf]
        %v507 = vld [vmem:[%s2 + $0x7c] sm:$0xf]
        %v508 = vpack.c.bf16 %v474, %v474
        %v509 = vpack.c.bf16 %v475, %v475
        %v510 = vld [vmem:[%s3 + $0x1] ss:$0 sm:$0xff]
        %v543 = vunpack.c.l.b16 %v476
        %v544 = vunpack.c.l.b16 %v477
        %v545 = vunpack.c.l.b16 %v478
        %v546 = vunpack.c.l.b16 %v479
        %v547 = vunpack.c.l.b16 %v480
        %v548 = vunpack.c.l.b16 %v481
        %v549 = vunpack.c.l.b16 %v482
        %v550 = vunpack.c.l.b16 %v483
        %v551 = vunpack.c.l.b16 %v484
        %v552 = vunpack.c.l.b16 %v485
        %v553 = vunpack.c.l.b16 %v486
        %v554 = vunpack.c.l.b16 %v487
        %v555 = vunpack.c.l.b16 %v488
        %v556 = vunpack.c.l.b16 %v489
        %v557 = vunpack.c.l.b16 %v490
        %v558 = vunpack.c.l.b16 %v491
        %v559 = vunpack.c.l.b16 %v492
        %v560 = vunpack.c.l.b16 %v493
        %v561 = vunpack.c.l.b16 %v494
        %v562 = vunpack.c.l.b16 %v495
        %v563 = vunpack.c.l.b16 %v496
        %v564 = vunpack.c.l.b16 %v497
        %v565 = vunpack.c.l.b16 %v498
        %v566 = vunpack.c.l.b16 %v499
        %v567 = vunpack.c.l.b16 %v500
        %v568 = vunpack.c.l.b16 %v501
        %v569 = vunpack.c.l.b16 %v502
        %v570 = vunpack.c.l.b16 %v503
        %v571 = vunpack.c.l.b16 %v504
        %v572 = vunpack.c.l.b16 %v505
        %v573 = vunpack.c.l.b16 %v506
        %v574 = vunpack.c.l.b16 %v507
        %v575 = vpack.c.b16 %v544, %v543
        %v576 = vpack.c.b16 %v546, %v545
        %v577 = vpack.c.b16 %v548, %v547
        %v578 = vpack.c.b16 %v550, %v549
        %v579 = vpack.c.b16 %v552, %v551
        %v580 = vpack.c.b16 %v554, %v553
        %v581 = vpack.c.b16 %v556, %v555
        %v582 = vpack.c.b16 %v558, %v557
        %v583 = vpack.c.b16 %v560, %v559
        %v584 = vpack.c.b16 %v562, %v561
        %v585 = vpack.c.b16 %v564, %v563
        %v586 = vpack.c.b16 %v566, %v565
        %v587 = vpack.c.b16 %v568, %v567
        %v588 = vpack.c.b16 %v570, %v569
        %v589 = vpack.c.b16 %v572, %v571
        %v590 = vpack.c.b16 %v574, %v573
        %607 = vmatpush.bf16.msra.mxu0 %v582
        %608 = vmatpush.bf16.msra.mxu0 %v581
        %609 = vmatpush.bf16.msra.mxu0 %v580
        %610 = vmatpush.bf16.msra.mxu0 %v579
        %611 = vmatpush.bf16.msra.mxu0 %v578
        %612 = vmatpush.bf16.msra.mxu0 %v577
        %613 = vmatpush.bf16.msra.mxu0 %v576
        %614 = vmatpush.bf16.msra.mxu0 %v575
        %615 = vmatmul.bf16.gmra.mxu0 %v508
        %v616 = vpop.f32.mrf.mxu0
        %v617 = vadd.f32 %v510, %v616
        %v618 = vpop.f32.mrf.mxu0
        %619 = vdwg.mxu0
        %620 = vmatpush.bf16.msra.mxu0 %v590
        %621 = vmatpush.bf16.msra.mxu0 %v589
        %622 = vmatpush.bf16.msra.mxu0 %v588
        %623 = vmatpush.bf16.msra.mxu0 %v587
        %624 = vmatpush.bf16.msra.mxu0 %v586
        %625 = vmatpush.bf16.msra.mxu0 %v585
        %626 = vmatpush.bf16.msra.mxu0 %v584
        %627 = vmatpush.bf16.msra.mxu0 %v583
        %628 = vmatmul.bf16.gmra.mxu0 %v509
        %v629 = vpop.f32.mrf.mxu0
        %v630 = vadd.f32 %v617, %v629
        %v631 = vpop.f32.mrf.mxu0
        %632 = vdwg.mxu0
        %v633 = vmin.f32 %v630, 20.0
        %v634 = vmul.f32 %v633, 1.442695
        %v635 = vpow.pop %v634
        %vm636 = vcmp.lt.f32.partialorder %v635, 0.0001
        %v637 = vmul.f32 %v635, 0.5
        %v638 = vsub.f32 1.0, %v637
        %v639 = vmul.f32 %v635, %v638
        %v640 = vadd.f32 %v635, 1.0
        %v641 = vlog2.pop %v640
        %v642 = vmul.f32 %v641, 0.6931472
        %v643 = vsel %vm636, %v639, %v642
        %vm644 = vcmp.gt.f32.partialorder %v630, 20.0
        %v645 = vsel %vm644, %v630, %v643
        %v646 = vld [vmem:[%s2 + $0x80] sm:$0xf]
        %v647 = vld [vmem:[%s2 + $0x84] sm:$0xf]
        %v648 = vld [vmem:[%s2 + $0x88] sm:$0xf]
        %v649 = vld [vmem:[%s2 + $0x8c] sm:$0xf]
        %v650 = vld [vmem:[%s2 + $0x90] sm:$0xf]
        %v651 = vld [vmem:[%s2 + $0x94] sm:$0xf]
        %v652 = vld [vmem:[%s2 + $0x98] sm:$0xf]
        %v653 = vld [vmem:[%s2 + $0x9c] sm:$0xf]
        %v654 = vld [vmem:[%s2 + $0xa0] sm:$0xf]
        %v655 = vld [vmem:[%s2 + $0xa4] sm:$0xf]
        %v656 = vld [vmem:[%s2 + $0xa8] sm:$0xf]
        %v657 = vld [vmem:[%s2 + $0xac] sm:$0xf]
        %v658 = vld [vmem:[%s2 + $0xb0] sm:$0xf]
        %v659 = vld [vmem:[%s2 + $0xb4] sm:$0xf]
        %v660 = vld [vmem:[%s2 + $0xb8] sm:$0xf]
        %v661 = vld [vmem:[%s2 + $0xbc] sm:$0xf]
        %v662 = vpack.c.bf16 %v645, %v645
        %v663 = vld [vmem:[%s3 + $0x2] ss:$0 sm:$0xff]
        %v680 = vunpack.c.l.b16 %v646
        %v681 = vunpack.c.l.b16 %v647
        %v682 = vunpack.c.l.b16 %v648
        %v683 = vunpack.c.l.b16 %v649
        %v684 = vunpack.c.l.b16 %v650
        %v685 = vunpack.c.l.b16 %v651
        %v686 = vunpack.c.l.b16 %v652
        %v687 = vunpack.c.l.b16 %v653
        %v688 = vunpack.c.l.b16 %v654
        %v689 = vunpack.c.l.b16 %v655
        %v690 = vunpack.c.l.b16 %v656
        %v691 = vunpack.c.l.b16 %v657
        %v692 = vunpack.c.l.b16 %v658
        %v693 = vunpack.c.l.b16 %v659
        %v694 = vunpack.c.l.b16 %v660
        %v695 = vunpack.c.l.b16 %v661
        %v696 = vpack.c.b16 %v681, %v680
        %v697 = vpack.c.b16 %v683, %v682
        %v698 = vpack.c.b16 %v685, %v684
        %v699 = vpack.c.b16 %v687, %v686
        %v700 = vpack.c.b16 %v689, %v688
        %v701 = vpack.c.b16 %v691, %v690
        %v702 = vpack.c.b16 %v693, %v692
        %v703 = vpack.c.b16 %v695, %v694
        %712 = vmatpush.bf16.msra.mxu0 %v703
        %713 = vmatpush.bf16.msra.mxu0 %v702
        %714 = vmatpush.bf16.msra.mxu0 %v701
        %715 = vmatpush.bf16.msra.mxu0 %v700
        %716 = vmatpush.bf16.msra.mxu0 %v699
        %717 = vmatpush.bf16.msra.mxu0 %v698
        %718 = vmatpush.bf16.msra.mxu0 %v697
        %719 = vmatpush.bf16.msra.mxu0 %v696
        %720 = vmatmul.bf16.gmra.mxu0 %v662
        %v721 = vpop.f32.mrf.mxu0
        %v722 = vadd.f32 %v663, %v721
        %v723 = vpop.f32.mrf.mxu0
        %724 = vdwg.mxu0
        %v725 = vmin.f32 %v722, 20.0
        %v726 = vmul.f32 %v725, 1.442695
        %v727 = vpow.pop %v726
        %vm728 = vcmp.lt.f32.partialorder %v727, 0.0001
        %v729 = vmul.f32 %v727, 0.5
        %v730 = vsub.f32 1.0, %v729
        %v731 = vmul.f32 %v727, %v730
        %v732 = vadd.f32 %v727, 1.0
        %v733 = vlog2.pop %v732
        %v734 = vmul.f32 %v733, 0.6931472
        %v735 = vsel %vm728, %v731, %v734
        %vm736 = vcmp.gt.f32.partialorder %v722, 20.0
        %v737 = vsel %vm736, %v722, %v735
        %v738 = vld [vmem:[%s2 + $0xc0] sm:$0xf]
        %v739 = vld [vmem:[%s2 + $0xc4] sm:$0xf]
        %v740 = vld [vmem:[%s2 + $0xc8] sm:$0xf]
        %v741 = vld [vmem:[%s2 + $0xcc] sm:$0xf]
        %v742 = vld [vmem:[%s2 + $0xd0] sm:$0xf]
        %v743 = vld [vmem:[%s2 + $0xd4] sm:$0xf]
        %v744 = vld [vmem:[%s2 + $0xd8] sm:$0xf]
        %v745 = vld [vmem:[%s2 + $0xdc] sm:$0xf]
        %v746 = vld [vmem:[%s2 + $0xe0] sm:$0xf]
        %v747 = vld [vmem:[%s2 + $0xe4] sm:$0xf]
        %v748 = vld [vmem:[%s2 + $0xe8] sm:$0xf]
        %v749 = vld [vmem:[%s2 + $0xec] sm:$0xf]
        %v750 = vld [vmem:[%s2 + $0xf0] sm:$0xf]
        %v751 = vld [vmem:[%s2 + $0xf4] sm:$0xf]
        %v752 = vld [vmem:[%s2 + $0xf8] sm:$0xf]
        %v753 = vld [vmem:[%s2 + $0xfc] sm:$0xf]
        %v754 = vpack.c.bf16 %v737, %v737
        %v755 = vld [vmem:[%s3 + $0x3] ss:$0 sm:$0xff]
        %v772 = vunpack.c.l.b16 %v738
        %v773 = vunpack.c.l.b16 %v739
        %v774 = vunpack.c.l.b16 %v740
        %v775 = vunpack.c.l.b16 %v741
        %v776 = vunpack.c.l.b16 %v742
        %v777 = vunpack.c.l.b16 %v743
        %v778 = vunpack.c.l.b16 %v744
        %v779 = vunpack.c.l.b16 %v745
        %v780 = vunpack.c.l.b16 %v746
        %v781 = vunpack.c.l.b16 %v747
        %v782 = vunpack.c.l.b16 %v748
        %v783 = vunpack.c.l.b16 %v749
        %v784 = vunpack.c.l.b16 %v750
        %v785 = vunpack.c.l.b16 %v751
        %v786 = vunpack.c.l.b16 %v752
        %v787 = vunpack.c.l.b16 %v753
        %v788 = vpack.c.b16 %v773, %v772
        %v789 = vpack.c.b16 %v775, %v774
        %v790 = vpack.c.b16 %v777, %v776
        %v791 = vpack.c.b16 %v779, %v778
        %v792 = vpack.c.b16 %v781, %v780
        %v793 = vpack.c.b16 %v783, %v782
        %v794 = vpack.c.b16 %v785, %v784
        %v795 = vpack.c.b16 %v787, %v786
        %804 = vmatpush.bf16.msra.mxu0 %v795
        %805 = vmatpush.bf16.msra.mxu0 %v794
        %806 = vmatpush.bf16.msra.mxu0 %v793
        %807 = vmatpush.bf16.msra.mxu0 %v792
        %808 = vmatpush.bf16.msra.mxu0 %v791
        %809 = vmatpush.bf16.msra.mxu0 %v790
        %810 = vmatpush.bf16.msra.mxu0 %v789
        %811 = vmatpush.bf16.msra.mxu0 %v788
        %812 = vmatmul.bf16.gmra.mxu0 %v754
        %v813 = vpop.f32.mrf.mxu0
        %v814 = vadd.f32 %v755, %v813
        %v815 = vpop.f32.mrf.mxu0
        %816 = vdwg.mxu0
        %v817 = vmin.f32 %v814, 20.0
        %v818 = vmul.f32 %v817, 1.442695
        %v819 = vpow.pop %v818
        %vm820 = vcmp.lt.f32.partialorder %v819, 0.0001
        %v821 = vmul.f32 %v819, 0.5
        %v822 = vsub.f32 1.0, %v821
        %v823 = vmul.f32 %v819, %v822
        %v824 = vadd.f32 %v819, 1.0
        %v825 = vlog2.pop %v824
        %v826 = vmul.f32 %v825, 0.6931472
        %v827 = vsel %vm820, %v823, %v826
        %vm828 = vcmp.gt.f32.partialorder %v814, 20.0
        %v829 = vsel %vm828, %v814, %v827
        %v830 = vld [vmem:[%s2 + $0x100] sm:$0xf]
        %v831 = vld [vmem:[%s2 + $0x104] sm:$0xf]
        %v832 = vld [vmem:[%s2 + $0x108] sm:$0xf]
        %v833 = vld [vmem:[%s2 + $0x10c] sm:$0xf]
        %v834 = vld [vmem:[%s2 + $0x110] sm:$0xf]
        %v835 = vld [vmem:[%s2 + $0x114] sm:$0xf]
        %v836 = vld [vmem:[%s2 + $0x118] sm:$0xf]
        %v837 = vld [vmem:[%s2 + $0x11c] sm:$0xf]
        %v838 = vld [vmem:[%s2 + $0x120] sm:$0xf]
        %v839 = vld [vmem:[%s2 + $0x124] sm:$0xf]
        %v840 = vld [vmem:[%s2 + $0x128] sm:$0xf]
        %v841 = vld [vmem:[%s2 + $0x12c] sm:$0xf]
        %v842 = vld [vmem:[%s2 + $0x130] sm:$0xf]
        %v843 = vld [vmem:[%s2 + $0x134] sm:$0xf]
        %v844 = vld [vmem:[%s2 + $0x138] sm:$0xf]
        %v845 = vld [vmem:[%s2 + $0x13c] sm:$0xf]
        %v846 = vpack.c.bf16 %v829, %v829
        %v847 = vld [vmem:[%s3 + $0x4] ss:$0 sm:$0xff]
        %v864 = vunpack.c.l.b16 %v830
        %v865 = vunpack.c.l.b16 %v831
        %v866 = vunpack.c.l.b16 %v832
        %v867 = vunpack.c.l.b16 %v833
        %v868 = vunpack.c.l.b16 %v834
        %v869 = vunpack.c.l.b16 %v835
        %v870 = vunpack.c.l.b16 %v836
        %v871 = vunpack.c.l.b16 %v837
        %v872 = vunpack.c.l.b16 %v838
        %v873 = vunpack.c.l.b16 %v839
        %v874 = vunpack.c.l.b16 %v840
        %v875 = vunpack.c.l.b16 %v841
        %v876 = vunpack.c.l.b16 %v842
        %v877 = vunpack.c.l.b16 %v843
        %v878 = vunpack.c.l.b16 %v844
        %v879 = vunpack.c.l.b16 %v845
        %v880 = vpack.c.b16 %v865, %v864
        %v881 = vpack.c.b16 %v867, %v866
        %v882 = vpack.c.b16 %v869, %v868
        %v883 = vpack.c.b16 %v871, %v870
        %v884 = vpack.c.b16 %v873, %v872
        %v885 = vpack.c.b16 %v875, %v874
        %v886 = vpack.c.b16 %v877, %v876
        %v887 = vpack.c.b16 %v879, %v878
        %896 = vmatpush.bf16.msra.mxu0 %v887
        %897 = vmatpush.bf16.msra.mxu0 %v886
        %898 = vmatpush.bf16.msra.mxu0 %v885
        %899 = vmatpush.bf16.msra.mxu0 %v884
        %900 = vmatpush.bf16.msra.mxu0 %v883
        %901 = vmatpush.bf16.msra.mxu0 %v882
        %902 = vmatpush.bf16.msra.mxu0 %v881
        %903 = vmatpush.bf16.msra.mxu0 %v880
        %904 = vmatmul.bf16.gmra.mxu0 %v846
        %v905 = vpop.f32.mrf.mxu0
        %v906 = vadd.f32 %v847, %v905
        %v907 = vpop.f32.mrf.mxu0
        %908 = vdwg.mxu0
        %v909 = vmin.f32 %v906, 20.0
        %v910 = vmul.f32 %v909, 1.442695
        %v911 = vpow.pop %v910
        %vm912 = vcmp.lt.f32.partialorder %v911, 0.0001
        %v913 = vmul.f32 %v911, 0.5
        %v914 = vsub.f32 1.0, %v913
        %v915 = vmul.f32 %v911, %v914
        %v916 = vadd.f32 %v911, 1.0
        %v917 = vlog2.pop %v916
        %v918 = vmul.f32 %v917, 0.6931472
        %v919 = vsel %vm912, %v915, %v918
        %vm920 = vcmp.gt.f32.partialorder %v906, 20.0
        %v921 = vsel %vm920, %v906, %v919
        %v922 = vld [vmem:[%s2 + $0x140] sm:$0xf]
        %v923 = vld [vmem:[%s2 + $0x144] sm:$0xf]
        %v924 = vld [vmem:[%s2 + $0x148] sm:$0xf]
        %v925 = vld [vmem:[%s2 + $0x14c] sm:$0xf]
        %v926 = vld [vmem:[%s2 + $0x150] sm:$0xf]
        %v927 = vld [vmem:[%s2 + $0x154] sm:$0xf]
        %v928 = vld [vmem:[%s2 + $0x158] sm:$0xf]
        %v929 = vld [vmem:[%s2 + $0x15c] sm:$0xf]
        %v930 = vld [vmem:[%s2 + $0x160] sm:$0xf]
        %v931 = vld [vmem:[%s2 + $0x164] sm:$0xf]
        %v932 = vld [vmem:[%s2 + $0x168] sm:$0xf]
        %v933 = vld [vmem:[%s2 + $0x16c] sm:$0xf]
        %v934 = vld [vmem:[%s2 + $0x170] sm:$0xf]
        %v935 = vld [vmem:[%s2 + $0x174] sm:$0xf]
        %v936 = vld [vmem:[%s2 + $0x178] sm:$0xf]
        %v937 = vld [vmem:[%s2 + $0x17c] sm:$0xf]
        %v938 = vpack.c.bf16 %v921, %v921
        %v939 = vld [vmem:[%s3 + $0x5] ss:$0 sm:$0xff]
        %v956 = vunpack.c.l.b16 %v922
        %v957 = vunpack.c.l.b16 %v923
        %v958 = vunpack.c.l.b16 %v924
        %v959 = vunpack.c.l.b16 %v925
        %v960 = vunpack.c.l.b16 %v926
        %v961 = vunpack.c.l.b16 %v927
        %v962 = vunpack.c.l.b16 %v928
        %v963 = vunpack.c.l.b16 %v929
        %v964 = vunpack.c.l.b16 %v930
        %v965 = vunpack.c.l.b16 %v931
        %v966 = vunpack.c.l.b16 %v932
        %v967 = vunpack.c.l.b16 %v933
        %v968 = vunpack.c.l.b16 %v934
        %v969 = vunpack.c.l.b16 %v935
        %v970 = vunpack.c.l.b16 %v936
        %v971 = vunpack.c.l.b16 %v937
        %v972 = vpack.c.b16 %v957, %v956
        %v973 = vpack.c.b16 %v959, %v958
        %v974 = vpack.c.b16 %v961, %v960
        %v975 = vpack.c.b16 %v963, %v962
        %v976 = vpack.c.b16 %v965, %v964
        %v977 = vpack.c.b16 %v967, %v966
        %v978 = vpack.c.b16 %v969, %v968
        %v979 = vpack.c.b16 %v971, %v970
        %988 = vmatpush.bf16.msra.mxu0 %v979
        %989 = vmatpush.bf16.msra.mxu0 %v978
        %990 = vmatpush.bf16.msra.mxu0 %v977
        %991 = vmatpush.bf16.msra.mxu0 %v976
        %992 = vmatpush.bf16.msra.mxu0 %v975
        %993 = vmatpush.bf16.msra.mxu0 %v974
        %994 = vmatpush.bf16.msra.mxu0 %v973
        %995 = vmatpush.bf16.msra.mxu0 %v972
        %996 = vmatmul.bf16.gmra.mxu0 %v938
        %v997 = vpop.f32.mrf.mxu0
        %v998 = vadd.f32 %v939, %v997
        %v999 = vpop.f32.mrf.mxu0
        %1000 = vdwg.mxu0
        %1001 = vst [vmem:[%s190] sm:$0xff] %v998
        %s1002 = sand.u32 %s115, 1
        %s1003 = scalar_lea.sflag [#allocation3], %s1002
        %s1004 = sand.u32 %s115, 1
        %s1005 = smul.addr %s1004, 8
        %s1006 = scalar_lea.vmem [#allocation2], %s1005
        // Predicated region
        $region37: #{conv_sparse_net_forward.1} parent=35 // pred_check
          %p1007 = pneg %p125
        $region38: #{conv_sparse_net_forward.1} parent=35 // pred_check_branch
          %1009 = sbr.rel (%p1007) target = $region40
        $region39: #{conv_sparse_net_forward.1} parent=35 // pred_region
          %1011 = vsyncadd %s1003, 0
          %s1012 = smul.addr %s18, 8
          %s1013 = scalar_lea.hbm %s4, %s1012
          %s1015 = sshll.u32 %s1006, 4
          %s1016 = int_to_ptr.vmem [resolvable:$true] %s1015
          %s1017 = sshll.u32 %s1013, 4
          %s1018 = int_to_ptr.hbm [resolvable:$true] %s1017
          %1020 = dma.vmem_to_hbm [thread:$0]  %s1016, 128, %s1018, %s1003
        $region40: #{conv_sparse_net_forward.1} parent=35 // pred_fallthru
          _
      $region36: #{conv_sparse_net_forward.1} parent=5 // pred_fallthru
        _
      %p1021 = scmp.le.s32.totalorder 2, %s13
      // Predicated region
      $region41: #{conv_sparse_net_forward.1} parent=5 // pred_check
        %p1022 = pneg %p1021
      $region42: #{conv_sparse_net_forward.1} parent=5 // pred_check_branch
        %1024 = sbr.rel (%p1022) target = $region44
      $region43: #{conv_sparse_net_forward.1} parent=5 // pred_region
        %s1025 = ssub.s32 %s13, 2
        // Predicated region
        $region45: #{conv_sparse_net_forward.1} parent=43 // pred_check
          %p1026 = pneg %p131
        $region46: #{conv_sparse_net_forward.1} parent=43 // pred_check_branch
          %1028 = sbr.rel (%p1026) target = $region48
        $region47: #{conv_sparse_net_forward.1} parent=43 // pred_region
          %s1029 = sand.u32 %s116, 1
          %s1030 = scalar_lea.sflag [#allocation3], %s1029
          %s1031 = sand.u32 %s116, 1
          %s1032 = smul.addr %s1031, 8
          %s1033 = scalar_lea.vmem [#allocation2], %s1032
          %1035 = dma.done %s1030, 128
        $region48: #{conv_sparse_net_forward.1} parent=43 // pred_fallthru
          _
      $region44: #{conv_sparse_net_forward.1} parent=5 // pred_fallthru
        _
    $region6: #{conv_sparse_net_forward.1} parent=1 // loop_footer
      %s17 = sadd.s32 1, %s13
    $region7: #{conv_sparse_net_forward.1} parent=1 // loop_footer_branch
      %12 = sbr.rel target = $region3
    $region8: #{conv_sparse_net_forward.1} parent=1 // loop_exit
      _
    %1036 = vsyncpa [#allocation3], 1
    %s1037 = scalar_lea.sflag [#allocation3], 1
    %1038 = vsyncpa %s1037, 1

</llo_original>
